<compile_context>
chip_gen: v6e
topology: v6e:2x2x1
jax: 0.10.0
libtpu: 0.0.40
codegen_flags: <defaults>
</compile_context>

<pallas_src>
import functools
import math
import re

import jax
import jax.numpy as jnp
from jax.experimental import pallas as pl
from jax.experimental.pallas import tpu as pltpu

_MASK_FILL = -9.0e15  # matches the PyTorch reference's -9e15 fill value


# ---------------------------------------------------------------------------
# Hardware introspection (generation-aware tiles / VMEM caps / softmax dtype)
# ---------------------------------------------------------------------------
def _tpu_generation():
    try:
        kind = jax.devices()[0].device_kind  # e.g. "TPU v5 lite", "TPU v6e"
        m = re.search(r"(\d+)", kind)
        return int(m.group(1)) if m else 0
    except Exception:
        return 0


def _vmem_capacity_bytes():
    try:
        return int(pltpu.get_tpu_info().vmem_capacity_bytes)
    except Exception:
        return 64 * 1024 * 1024  # conservative fallback: assume v7x-sized VMEM


def _round_up(x, m):
    return ((x + m - 1) // m) * m


def _pick_tile(n, target, align):
    """Largest `align`-multiple divisor of n that is <= target, else n (full)."""
    if n <= target:
        return n
    t = (target // align) * align
    while t >= align:
        if n % t == 0:
            return t
        t -= align
    return n


def preprocess_adjacency(adj):
    """One-time conversion of a (possibly float) adjacency to the int8 0/1 form
    the kernel streams.  For static graphs call this once and reuse the result
    across heads / layers / steps: it keeps a ~5x B*N^2-byte HBM pass out of
    every forward call."""
    return (adj > 0).astype(jnp.int8)


# ---------------------------------------------------------------------------
# Stage 1: node-feature projection  Wh = h @ W  (bf16 in, f32 accumulate)
# ---------------------------------------------------------------------------
def _project_kernel(h_ref, w_ref, wh_ref):
    # h_ref: (1, TP, F_in), w_ref: (F_in, F_out), wh_ref: (1, TP, F_out)
    wh = jnp.dot(h_ref[0], w_ref[...], preferred_element_type=jnp.float32)
    wh_ref[0] = wh.astype(wh_ref.dtype)


# ---------------------------------------------------------------------------
# Stage 2: flash-style masked attention over neighbor (key) tiles
# ---------------------------------------------------------------------------
def _gat_attention_kernel(whk_ref, f1_ref, f2_ref, adj_ref, out_ref,
                          m_ref, l_ref, acc_ref,
                          *, alpha, concat, softmax_dtype):
    # whk_ref: (1, TK, F_out) bf16   Wh for the neighbor (key) tile
    # f1_ref:  (1, TQ, 1)     f32    precomputed Wh_q . a1 (column, resident)
    # f2_ref:  (1, 1, TK)     f32    precomputed Wh_k . a2 (lane-major row)
    # adj_ref: (1, TQ, TK)    int8   adjacency tile (0 / 1)
    # out_ref: (1, TQ, F_out)
    # scratch: m (TQ,1), l (TQ,1), acc (TQ,F_out)   all f32
    ki = pl.program_id(2)

    @pl.when(ki == 0)
    def _init():
        m_ref[...] = jnp.full(m_ref.shape, -jnp.inf, jnp.float32)
        l_ref[...] = jnp.zeros(l_ref.shape, jnp.float32)
        acc_ref[...] = jnp.zeros(acc_ref.shape, jnp.float32)

    wh_k = whk_ref[0]                 # (TK, F_out) bf16
    f1 = f1_ref[0]                    # (TQ, 1) f32 column
    f2 = f2_ref[0]                    # (1, TK) f32 row

    # e[i, j] = leakyrelu(f1[i] + f2[j]); mask with the PyTorch -9e15 fill.
    e = f1 + f2                                           # (TQ, TK) f32
    if 0.0 <= alpha <= 1.0:
        e = jnp.maximum(e, alpha * e)                     # fused LeakyReLU
    else:
        e = jnp.where(e > 0.0, e, alpha * e)
    e = jnp.where(adj_ref[0] > 0, e, _MASK_FILL)          # int8 compared directly

    # --- online softmax update (flash-attention pattern) -------------------
    m_prev = m_ref[...]
    m_new = jnp.maximum(m_prev, jnp.max(e, axis=-1, keepdims=True))
    corr = jnp.exp(m_prev - m_new)
    if softmax_dtype == jnp.float32:
        p = jnp.exp(e - m_new)                                        # f32
        l_ref[...] = corr * l_ref[...] + jnp.sum(p, axis=-1, keepdims=True)
        p_mm = p.astype(wh_k.dtype)
    else:
        # bf16 elementwise / EUP path (v6e / v7x): halves the bytes per pass
        # over the (TQ, TK) tile; m / l / acc and the row-max stay in f32.
        p = jnp.exp((e - m_new).astype(softmax_dtype))                # bf16
        l_ref[...] = corr * l_ref[...] + jnp.sum(
            p.astype(jnp.float32), axis=-1, keepdims=True)
        p_mm = p
    acc_ref[...] = corr * acc_ref[...] + jnp.dot(
        p_mm, wh_k, preferred_element_type=jnp.float32)
    m_ref[...] = m_new

    # TODO(synk): F.dropout(attention) is skipped — inference (training=False)
    # semantics, where dropout is the identity.

    @pl.when(ki == pl.num_programs(2) - 1)
    def _finalize():
        h_prime = acc_ref[...] * pl.reciprocal(l_ref[...], approx=True)
        if concat:
            h_prime = jnp.where(h_prime > 0.0, h_prime, jnp.exp(h_prime) - 1.0)
        out_ref[0] = h_prime.astype(out_ref.dtype)


# ---------------------------------------------------------------------------
# Wrapper
# ---------------------------------------------------------------------------
def graph_attention_layer(h, adj, W, a, *, alpha, concat=True,
                          block_q=None, block_k=None, block_proj=512,
                          compute_dtype=jnp.bfloat16, softmax_dtype=None):
    """Pallas GAT forward.

    h:   (B, N, F_in)    node features
    adj: (B, N, N)       adjacency. Pass the int8 0/1 form (preprocess_adjacency)
                         to keep the `>0` conversion out of the per-call path;
                         float/bool are accepted and converted.
    W:   (F_in, F_out)   projection weight
    a:   (2*F_out, 1)    attention vector
    """
    B, N, F_in = h.shape
    F_out = W.shape[1]
    out_dtype = h.dtype

    gen = _tpu_generation()
    vmem_cap = _vmem_capacity_bytes()
    big_vmem = vmem_cap >= 100 * 1024 * 1024       # v5e/v6e: 128 MiB, v7x: 64 MiB
    if block_q is None:
        block_q = 512 if big_vmem else 256
    if block_k is None:
        block_k = 1024 if big_vmem else 512
    if softmax_dtype is None:
        # bf16 VALU/EUP exists on v6e/v7x; keep f32 on v5e and unknown chips.
        softmax_dtype = compute_dtype if gen >= 6 else jnp.float32
    softmax_dtype = jnp.dtype(softmax_dtype)

    # ---- adjacency: accept a pre-converted mask (hoisted out of hot path) --
    if adj.dtype == jnp.int8:
        adj_i8 = adj
    elif adj.dtype == jnp.bool_:
        adj_i8 = adj.astype(jnp.int8)
    else:
        # TODO(synk): for static graphs convert once with preprocess_adjacency.
        adj_i8 = (adj > 0).astype(jnp.int8)

    # ---- pad awkward N to a lane-aligned size (mask hides the pad keys) ----
    if N > 256 and N % 128 != 0:
        n_p = _round_up(N, 128)
    else:
        n_p = N

    h_c = h.astype(compute_dtype)
    W_c = W.astype(compute_dtype)
    if n_p != N:
        # TODO(synk): callers with static graphs should pre-pad adj once.
        h_c = jnp.pad(h_c, ((0, 0), (0, n_p - N), (0, 0)))
        adj_i8 = jnp.pad(adj_i8, ((0, 0), (0, n_p - N), (0, n_p - N)))

    tq = _pick_tile(n_p, block_q, 32)    # query tile (32: int8 sublane packing)
    tk = _pick_tile(n_p, block_k, 128)   # neighbor tile (lane aligned)
    tp = _pick_tile(n_p, block_proj, 8)  # projection tile

    # Guarantee >=2 units of parallel grid work (v7x has 2 TensorCores).
    while (B * (n_p // tq) < 2 and tq % 2 == 0 and (tq // 2) % 8 == 0
           and n_p % (tq // 2) == 0):
        tq //= 2

    # ---- stage 1: Wh = h @ W (bf16 out, f32 accumulation) ------------------
    wh = pl.pallas_call(
        _project_kernel,
        out_shape=jax.ShapeDtypeStruct((B, n_p, F_out), compute_dtype),
        grid_spec=pltpu.PrefetchScalarGridSpec(
            num_scalar_prefetch=0,
            grid=(B, n_p // tp),
            in_specs=[
                pl.BlockSpec((1, tp, F_in), lambda b, i: (b, i, 0)),
                pl.BlockSpec((F_in, F_out), lambda b, i: (0, 0)),
            ],
            out_specs=pl.BlockSpec((1, tp, F_out), lambda b, i: (b, i, 0)),
        ),
        compiler_params=pltpu.CompilerParams(
            dimension_semantics=("parallel", "parallel")),
    )(h_c, W_c)

    # ---- precompute attention halves ONCE (review: f2 was recomputed per
    # query tile and transposed every grid step inside the old kernel).
    #   f1[b,i] = Wh[b,i].a1  stored column-major (B, N, 1) -> (tq, 1) blocks
    #   f2[b,j] = Wh[b,j].a2  stored lane-major   (B, 1, N) -> (1, tk) blocks
    # Tiny epilogue (one extra read of Wh); stage 2 never touches `a` and
    # never transposes.
    a1 = a[:F_out, 0].astype(jnp.float32)
    a2 = a[F_out:, 0].astype(jnp.float32)
    whf = wh.astype(jnp.float32)
    f1 = jnp.einsum("bno,o->bn", whf, a1)[..., None]       # (B, n_p, 1) f32
    f2 = jnp.einsum("bno,o->bn", whf, a2)[:, None, :]      # (B, 1, n_p) f32

    # ---- stage 2: tiled masked attention with online softmax --------------
    kernel = functools.partial(_gat_attention_kernel, alpha=float(alpha),
                               concat=bool(concat), softmax_dtype=softmax_dtype)

    cd = jnp.dtype(compute_dtype).itemsize
    ob = jnp.dtype(out_dtype).itemsize
    vmem_est = (
        2 * tk * F_out * cd                          # double-buffered Wh key tiles
        + 2 * tq * tk                                # double-buffered int8 adj
        + 2 * ((tq + 7) // 8) * 8 * 128 * 4          # (tq,1) f1 blocks (lane pad)
        + 2 * ((tk + 127) // 128) * 8 * 128 * 4      # (1,tk) f2 blocks (sublane pad)
        + 2 * tq * F_out * ob                        # double-buffered output tile
        + tq * F_out * 4 + 2 * tq * 4                # acc / m / l scratch
        + 10 * tq * tk * 4                           # logit / prob temporaries
    )
    # ~48 MiB cap on 64 MiB-VMEM v7x, ~96 MiB on 128 MiB v5e/v6e.
    vmem_budget = max(32 * 1024 * 1024, (vmem_cap * 3) // 4)
    vmem_limit = int(min(max(2 * vmem_est, 32 * 1024 * 1024), vmem_budget))

    out = pl.pallas_call(
        kernel,
        out_shape=jax.ShapeDtypeStruct((B, n_p, F_out), out_dtype),
        grid_spec=pltpu.PrefetchScalarGridSpec(
            num_scalar_prefetch=0,
            grid=(B, n_p // tq, n_p // tk),
            in_specs=[
                pl.BlockSpec((1, tk, F_out), lambda b, qi, ki: (b, ki, 0)),
                pl.BlockSpec((1, tq, 1), lambda b, qi, ki: (b, qi, 0)),
                pl.BlockSpec((1, 1, tk), lambda b, qi, ki: (b, 0, ki)),
                pl.BlockSpec((1, tq, tk), lambda b, qi, ki: (b, qi, ki)),
            ],
            out_specs=pl.BlockSpec((1, tq, F_out), lambda b, qi, ki: (b, qi, 0)),
            scratch_shapes=[
                pltpu.VMEM((tq, 1), jnp.float32),      # running max
                pltpu.VMEM((tq, 1), jnp.float32),      # running sum
                pltpu.VMEM((tq, F_out), jnp.float32),  # output accumulator
            ],
        ),
        compiler_params=pltpu.CompilerParams(
            dimension_semantics=("parallel", "parallel", "arbitrary"),
            vmem_limit_bytes=vmem_limit,
        ),
    )(wh, f1, f2, adj_i8)

    if n_p != N:
        out = out[:, :N, :]
    return out


# ---------------------------------------------------------------------------
# References & test
# ---------------------------------------------------------------------------
def _xavier_uniform(key, shape, gain):
    fan_in, fan_out = shape[0], shape[1]
    bound = gain * math.sqrt(6.0 / (fan_in + fan_out))
    return jax.random.uniform(key, shape, jnp.float32, minval=-bound, maxval=bound)


def _reference_f32(h, adj, W, a, *, alpha, concat=True):
    F_out = W.shape[1]
    Wh = jnp.matmul(h, W)
    e = jnp.matmul(Wh, a[:F_out, :]) + jnp.swapaxes(jnp.matmul(Wh, a[F_out:, :]), 1, 2)
    e = jnp.where(e > 0, e, alpha * e)
    att = jnp.where(adj > 0, e, -9.0e15)
    att = jax.nn.softmax(att, axis=-1)
    h_prime = jnp.matmul(att, Wh)
    return jax.nn.elu(h_prime) if concat else h_prime


def _reference_matched(h, adj, W, a, *, alpha, concat=True,
                       compute_dtype=jnp.bfloat16):
    """Mirrors the kernel's mixed precision (bf16 MXU inputs, f32 accumulation,
    f32 logits / softmax statistics)."""
    F_out = W.shape[1]
    h_c = h.astype(compute_dtype)
    W_c = W.astype(compute_dtype)
    Wh = jnp.einsum("bnf,fo->bno", h_c, W_c, preferred_element_type=jnp.float32)
    Wh_c = Wh.astype(compute_dtype)
    Wh_f = Wh_c.astype(jnp.float32)
    f1 = jnp.sum(Wh_f * a[:F_out, 0], axis=-1, keepdims=True)
    f2 = jnp.sum(Wh_f * a[F_out:, 0], axis=-1, keepdims=True)
    e = f1 + jnp.swapaxes(f2, 1, 2)
    e = jnp.where(e > 0, e, alpha * e)
    att = jnp.where(adj > 0, e, -9.0e15)
    att = jax.nn.softmax(att, axis=-1)
    h_prime = jnp.einsum("bij,bjo->bio", att.astype(compute_dtype), Wh_c,
                         preferred_element_type=jnp.float32)
    return jax.nn.elu(h_prime) if concat else h_prime


def _run_case(key, *, B, N, F_in, F_out, alpha, concat, pass_int8_adj=True, **kw):
    k_h, k_adj, k_W, k_a = jax.random.split(key, 4)
    h = jax.random.normal(k_h, (B, N, F_in), jnp.float32)
    adj = (jax.random.uniform(k_adj, (B, N, N)) > 0.5).astype(jnp.float32)
    adj = ((adj + jnp.eye(N, dtype=jnp.float32)[None]) > 0).astype(jnp.float32)
    W = _xavier_uniform(k_W, (F_in, F_out), gain=1.414)
    a = _xavier_uniform(k_a, (2 * F_out, 1), gain=1.414)

    # Demonstrate the hoisted, one-time adjacency conversion (static graphs).
    adj_in = preprocess_adjacency(adj) if pass_int8_adj else adj

    out = graph_attention_layer(h, adj_in, W, a, alpha=alpha, concat=concat, **kw)
    out = jax.block_until_ready(out)
    assert out.shape == (B, N, F_out)

    ref_m = _reference_matched(h, adj, W, a, alpha=alpha, concat=concat)
    ref_f = _reference_f32(h, adj, W, a, alpha=alpha, concat=concat)
    assert jnp.allclose(out, ref_m, atol=4e-2, rtol=4e-2), \
        "mismatch vs matched-precision reference"
    assert jnp.allclose(out, ref_f, atol=1e-1, rtol=1e-1), \
        "mismatch vs f32 reference"


if __name__ == "__main__":
    alpha = 0.2
    key = jax.random.PRNGKey(0)
    k1, k2, k3, k4 = jax.random.split(key, 4)

    # Small shapes consistent with the module (single-tile path), both branches;
    # second case exercises the in-wrapper float->int8 adjacency fallback.
    _run_case(k1, B=2, N=8, F_in=16, F_out=32, alpha=alpha, concat=True)
    _run_case(k2, B=2, N=8, F_in=16, F_out=32, alpha=alpha, concat=False,
              pass_int8_adj=False)

    # Larger case exercising (TQ, TK) tiling + online softmax over key tiles.
    _run_case(k3, B=2, N=256, F_in=16, F_out=32, alpha=alpha, concat=True,
              block_q=64, block_k=128, block_proj=128)

    # Non-128-multiple N > 256: exercises the zero-padding path + output slice.
    _run_case(k4, B=2, N=320, F_in=16, F_out=32, alpha=alpha, concat=True,
              block_q=64, block_k=128, block_proj=64)

    print("KERNEL_OK")
</pallas_src>

<mosaic_0001>
module attributes {stable_mosaic.version = 11 : i64} {
  func.func @_project_kernel(%arg0: i32, %arg1: i32, %arg2: memref<1x8x16xbf16, #tpu.memory_space<vmem>>, %arg3: memref<16x32xbf16, #tpu.memory_space<vmem>>, %arg4: memref<1x8x32xbf16, #tpu.memory_space<vmem>>) attributes {dimension_semantics = [#tpu.dimension_semantics<parallel>, #tpu.dimension_semantics<parallel>], iteration_bounds = array<i64: 2, 1>, scalar_prefetch = 0 : i64, scratch_operands = 0 : i64, tpu.core_type = #tpu.core_type<tc>, window_params = [{transform_indices = @transform_0, window_bounds = array<i64: 1, 8, 16>}, {pipeline_mode = #tpu.pipeline_mode<synchronous>, transform_indices = @transform_1, window_bounds = array<i64: 16, 32>}, {transform_indices = @transform_2, window_bounds = array<i64: 1, 8, 32>}]} {
    %c0 = arith.constant 0 : index
    %c0_0 = arith.constant 0 : index
    %c0_1 = arith.constant 0 : index
    %0 = vector.load %arg2[%c0, %c0_0, %c0_1] : memref<1x8x16xbf16, #tpu.memory_space<vmem>>, vector<1x8x16xbf16>
    %1 = vector.shape_cast %0 : vector<1x8x16xbf16> to vector<8x16xbf16>
    %c0_2 = arith.constant 0 : index
    %c0_3 = arith.constant 0 : index
    %2 = vector.load %arg3[%c0_2, %c0_3] : memref<16x32xbf16, #tpu.memory_space<vmem>>, vector<16x32xbf16>
    %cst = arith.constant dense<0.000000e+00> : vector<8x32xf32>
    %3 = tpu.matmul %1, %2, %cst {dimension_numbers = #tpu.dot_dimension_numbers<[1], [0], [0], [1], [0, 0, 1, 1], [], []>} : vector<8x16xbf16>, vector<16x32xbf16>, vector<8x32xf32> -> vector<8x32xf32>
    %4 = arith.truncf %3 : vector<8x32xf32> to vector<8x32xbf16>
    %c0_4 = arith.constant 0 : index
    %c0_5 = arith.constant 0 : index
    %c0_6 = arith.constant 0 : index
    %5 = vector.load %arg4[%c0_4, %c0_5, %c0_6] : memref<1x8x32xbf16, #tpu.memory_space<vmem>>, vector<1x8x32xbf16>
    %6 = vector.shape_cast %5 : vector<1x8x32xbf16> to vector<8x32xbf16>
    %7 = vector.shape_cast %4 : vector<8x32xbf16> to vector<1x8x32xbf16>
    tpu.vector_store %arg4[%c0_4, %c0_5, %c0_6], %7 {strides = array<i32>} : memref<1x8x32xbf16, #tpu.memory_space<vmem>>, vector<1x8x32xbf16>,
    return
  }
  func.func @transform_0(%arg0: i32, %arg1: i32) -> (i32, i32, i32) {
    %c0_i32 = arith.constant 0 : i32
    %c0_i32_0 = arith.constant 0 : i32
    return %arg0, %arg1, %c0_i32 : i32, i32, i32
  }
  func.func @transform_1(%arg0: i32, %arg1: i32) -> (i32, i32) {
    %c0_i32 = arith.constant 0 : i32
    %c0_i32_0 = arith.constant 0 : i32
    %c0_i32_1 = arith.constant 0 : i32
    return %c0_i32, %c0_i32_0 : i32, i32
  }
  func.func @transform_2(%arg0: i32, %arg1: i32) -> (i32, i32, i32) {
    %c0_i32 = arith.constant 0 : i32
    %c0_i32_0 = arith.constant 0 : i32
    return %arg0, %arg1, %c0_i32 : i32, i32, i32
  }
}

</mosaic_0001>

<llo_original>
// kernel: tpu_custom_call.1
$region0: #{tpu_custom_call.1}
  #allocation0 [shape = 'u32[]', space=smem, size = 0x4, offset = 0x4, fixed_abs, tag = 'smem constant byte address 0x4 - core index']
  #allocation1 [shape = 'u32[144,128]{1,0:T(1,128)}', space=vmem, size = 0x12000, scoped, tag = 'internal scratch']
  %s0 = inlined_call_operand.hbm [shape: bf16[2,8,16], index: 0, kind: input, shape index: {}]
  %s1 = inlined_call_operand.hbm [shape: bf16[16,32], index: 1, kind: input, shape index: {}]
  %s2 = inlined_call_operand.hbm [shape: bf16[2,8,32], index: 2, kind: output, shape index: {}]
  %s3 = sld [smem:[#allocation0]]
  $region49: #{tpu_custom_call.1} parent=0
    _
  %s5 = ssub.s32 1, %s3
  %s6 = scalar_select 0, %s5, %s3
  $region1: #{tpu_custom_call.1} parent=0
    #allocation2 [shape = 'u8[4096]{0}', space=vmem, size = 0x1000, scoped, tag = 'input window, operand 0']
    #allocation3 [shape = 's32[2]{0}', space=sflag, size = 0x8, scoped, tag = 'scoped memory for tpu_custom_call.1']
    #allocation4 [shape = 's32[2]{0}', space=sflag, size = 0x8, scoped, tag = 'scoped memory for tpu_custom_call.1']
    #allocation5 [shape = 'u8[4096]{0}', space=vmem, size = 0x1000, scoped, tag = 'input window, operand 1, single buffered']
    #allocation6 [shape = 's32[1]{0}', space=sflag, size = 0x4, scoped, tag = 'scoped memory for tpu_custom_call.1']
    #allocation7 [shape = 'u8[4096]{0}', space=vmem, size = 0x1000, scoped, tag = 'output window, operand 0']
    %7 = vsyncpa [#allocation3], 0
    %s8 = scalar_lea.sflag [#allocation3], 1
    %9 = vsyncpa %s8, 0
    %10 = vsyncpa [#allocation6], 0
    %11 = vsyncpa [#allocation4], 0
    %s12 = scalar_lea.sflag [#allocation4], 1
    %13 = vsyncpa %s12, 0
    loop: start=0, step=1, limit=4
    $region2: #{tpu_custom_call.1} parent=1 // loop_pre_header
      _
    $region3: #{tpu_custom_call.1} parent=1 // loop_header
      %s15 = sphi 0, %s19
      %p16 = scmp.ge.s32.totalorder %s15, 4
      %s22 = sphi 0, %s34
      %s23 = sphi 0, %s30
      %s24 = sphi 0, %s22
      %s25 = sphi 0, %s23
      %s26 = sphi 0, %s24
      %s27 = sphi 0, %s25
      %s39 = sphi 0, %s41
      %s42 = sphi 0, %s39
      %s43 = sphi 0, %s42
      %s59 = sphi 0, %s43
      %s63 = sphi 0, %s63
      %s65 = sphi 0, %s63
      %s66 = sphi 0, %s65
      %s80 = sphi 0, %s66
      %s88 = sphi 0, %s90
      %s91 = sphi 0, %s88
      %s92 = sphi 0, %s91
      %s108 = sphi 0, %s92
    $region4: #{tpu_custom_call.1} parent=1 // loop_header_branch
      %18 = sbr.rel (%p16) target = $region8
    $region5: #{tpu_custom_call.1} parent=1 // loop_body
      %s20 = ssub.s32 %s15, 1
      %s21 = ssub.s32 %s15, 2
      %s28 = sadd.s32 1, %s23
      %p29 = scmp.ge.s32.totalorder %s28, 1
      %s30 = scalar_select %p29, 0, %s28
      %s31 = sadd.s32 1, %s22
      %s32 = scalar_select %p29, %s31, %s22
      %p33 = scmp.ge.s32.totalorder %s32, 2
      %s34 = scalar_select %p33, 0, %s32
      %s35 = ssub.s32 %s22, %s34
      %s36 = ssub.s32 %s23, %s30
      %s37 = sor.u32 %s35, %s36
      %p38 = scmp.eq.s32.totalorder %s37, 0
      %s40 = sadd.s32 %s39, 1
      %s41 = scalar_select %p38, %s39, %s40
      %p44 = pneg %p38
      %p45 = scmp.eq.s32.totalorder %s15, 1
      %p46 = por %p44, %p45
      %p47 = scmp.ne.s32.totalorder %s39, %s42
      %p48 = scmp.eq.s32.totalorder %s15, 0
      %p49 = por %p47, %p48
      %p50 = scmp.ne.s32.totalorder %s39, %s42
      %p51 = scmp.eq.s32.totalorder %s20, 1
      %p52 = por %p50, %p51
      %p53 = scmp.ne.s32.totalorder %s42, %s43
      %p54 = scmp.eq.s32.totalorder %s20, 0
      %p55 = por %p53, %p54
      %p56 = scmp.ne.s32.totalorder %s42, %s43
      %p57 = scmp.eq.s32.totalorder %s21, 1
      %p58 = por %p56, %p57
      %p60 = scmp.ne.s32.totalorder %s43, %s59
      %p61 = scmp.eq.s32.totalorder %s21, 0
      %p62 = por %p60, %p61
      %s64 = sadd.s32 %s63, 1
      %p67 = scmp.eq.s32.totalorder %s15, 1
      %p68 = scmp.ne.s32.totalorder %s63, %s65
      %p69 = scmp.eq.s32.totalorder %s15, 0
      %p70 = por %p68, %p69
      %p71 = scmp.ne.s32.totalorder %s63, %s65
      %p72 = scmp.eq.s32.totalorder %s20, 1
      %p73 = por %p71, %p72
      %p74 = scmp.ne.s32.totalorder %s65, %s66
      %p75 = scmp.eq.s32.totalorder %s20, 0
      %p76 = por %p74, %p75
      %p77 = scmp.ne.s32.totalorder %s65, %s66
      %p78 = scmp.eq.s32.totalorder %s21, 1
      %p79 = por %p77, %p78
      %p81 = scmp.ne.s32.totalorder %s66, %s80
      %p82 = scmp.eq.s32.totalorder %s21, 0
      %p83 = por %p81, %p82
      %s84 = ssub.s32 %s22, %s34
      %s85 = ssub.s32 %s23, %s30
      %s86 = sor.u32 %s84, %s85
      %p87 = scmp.eq.s32.totalorder %s86, 0
      %s89 = sadd.s32 %s88, 1
      %s90 = scalar_select %p87, %s88, %s89
      %p93 = pneg %p87
      %p94 = scmp.eq.s32.totalorder %s15, 1
      %p95 = por %p93, %p94
      %p96 = scmp.ne.s32.totalorder %s88, %s91
      %p97 = scmp.eq.s32.totalorder %s15, 0
      %p98 = por %p96, %p97
      %p99 = scmp.ne.s32.totalorder %s88, %s91
      %p100 = scmp.eq.s32.totalorder %s20, 1
      %p101 = por %p99, %p100
      %p102 = scmp.ne.s32.totalorder %s91, %s92
      %p103 = scmp.eq.s32.totalorder %s20, 0
      %p104 = por %p102, %p103
      %p105 = scmp.ne.s32.totalorder %s91, %s92
      %p106 = scmp.eq.s32.totalorder %s21, 1
      %p107 = por %p105, %p106
      %p109 = scmp.ne.s32.totalorder %s92, %s108
      %p110 = scmp.eq.s32.totalorder %s21, 0
      %p111 = por %p109, %p110
      %p112 = scmp.le.s32.totalorder 1, %s15
      %p113 = scmp.lt.s32.totalorder %s15, 3
      %p114 = pnand %p112, %p113
      %p115 = pneg %p114
      // Predicated region
      $region9: #{tpu_custom_call.1} parent=5 // pred_check
        _
      $region10: #{tpu_custom_call.1} parent=5 // pred_check_branch
        %117 = sbr.rel (%p114) target = $region12
      $region11: #{tpu_custom_call.1} parent=5 // pred_region
        %s118 = ssub.s32 %s15, 1
        // Predicated region
        $region13: #{tpu_custom_call.1} parent=11 // pred_check
          %p119 = pneg %p76
        $region14: #{tpu_custom_call.1} parent=11 // pred_check_branch
          %121 = sbr.rel (%p119) target = $region16
        $region15: #{tpu_custom_call.1} parent=11 // pred_region
          %s123 = ssub.s32 128, 128
          %124 = vsyncadd [#allocation6], %s123
          %s125 = sshll.u32 [#allocation5], 4
          %s126 = int_to_ptr.vmem [resolvable:$true] %s125
          %131 = dma.hbm_to_vmem [thread:$0]  %s1, 128, %s126, [#allocation6], 64, 64, 4
        $region16: #{tpu_custom_call.1} parent=11 // pred_fallthru
          _
      $region12: #{tpu_custom_call.1} parent=5 // pred_fallthru
        _
      %p132 = scmp.lt.s32.totalorder %s15, 2
      // Predicated region
      $region17: #{tpu_custom_call.1} parent=5 // pred_check
        %p133 = pneg %p132
      $region18: #{tpu_custom_call.1} parent=5 // pred_check_branch
        %135 = sbr.rel (%p133) target = $region20
      $region19: #{tpu_custom_call.1} parent=5 // pred_region
        // Predicated region
        $region21: #{tpu_custom_call.1} parent=19 // pred_check
          %p136 = pneg %p49
        $region22: #{tpu_custom_call.1} parent=19 // pred_check_branch
          %138 = sbr.rel (%p136) target = $region24
        $region23: #{tpu_custom_call.1} parent=19 // pred_region
          %s139 = sand.u32 %s39, 1
          %s140 = scalar_lea.sflag [#allocation3], %s139
          %s141 = sand.u32 %s39, 1
          %s142 = smul.addr %s141, 4
          %s143 = scalar_lea.vmem [#allocation2], %s142
          %s145 = ssub.s32 64, 64
          %146 = vsyncadd %s140, %s145
          %s147 = sadd.s32 %s23, %s22
          %s148 = smul.addr %s147, 64
          %s149 = scalar_lea.hbm %s0, %s148
          %s151 = sshll.u32 %s143, 4
          %s152 = int_to_ptr.vmem [resolvable:$true] %s151
          %154 = dma.hbm_to_vmem [thread:$0]  %s149, 64, %s152, %s140
        $region24: #{tpu_custom_call.1} parent=19 // pred_fallthru
          _
      $region20: #{tpu_custom_call.1} parent=5 // pred_fallthru
        _
      %p155 = scmp.le.s32.totalorder 1, %s15
      %p156 = scmp.lt.s32.totalorder %s15, 3
      %p157 = pnand %p155, %p156
      %p158 = pneg %p157
      // Predicated region
      $region25: #{tpu_custom_call.1} parent=5 // pred_check
        _
      $region26: #{tpu_custom_call.1} parent=5 // pred_check_branch
        %160 = sbr.rel (%p157) target = $region28
      $region27: #{tpu_custom_call.1} parent=5 // pred_region
        %s161 = ssub.s32 %s15, 1
        %s162 = sand.u32 %s42, 1
        %s163 = scalar_lea.sflag [#allocation3], %s162
        %s164 = sand.u32 %s42, 1
        %s165 = smul.addr %s164, 4
        %s166 = scalar_lea.vmem [#allocation2], %s165
        // Predicated region
        $region29: #{tpu_custom_call.1} parent=27 // pred_check
          %p167 = pneg %p55
        $region30: #{tpu_custom_call.1} parent=27 // pred_check_branch
          %169 = sbr.rel (%p167) target = $region32
        $region31: #{tpu_custom_call.1} parent=27 // pred_region
          %170 = dma.done %s163, 64
        $region32: #{tpu_custom_call.1} parent=27 // pred_fallthru
          _
        // Predicated region
        $region33: #{tpu_custom_call.1} parent=27 // pred_check
          %p171 = pneg %p76
        $region34: #{tpu_custom_call.1} parent=27 // pred_check_branch
          %173 = sbr.rel (%p171) target = $region36
        $region35: #{tpu_custom_call.1} parent=27 // pred_region
          %174 = dma.done [#allocation6], 128
        $region36: #{tpu_custom_call.1} parent=27 // pred_fallthru
          _
        %s175 = sand.u32 %s42, 1
        %s176 = scalar_lea.sflag [#allocation3], %s175
        %s177 = sand.u32 %s42, 1
        %s178 = smul.addr %s177, 4
        %s179 = scalar_lea.vmem [#allocation2], %s178
        %p180 = pneg %p55
        %p181 = pneg %p52
        %p182 = pneg %p76
        %p183 = pneg %p73
        %p184 = pneg %p104
        %p185 = pneg %p101
        %s186 = sand.u32 %s91, 1
        %s187 = scalar_lea.sflag [#allocation4], %s186
        %s188 = sand.u32 %s91, 1
        %s189 = smul.addr %s188, 4
        %s190 = scalar_lea.vmem [#allocation7], %s189
        %v192 = vld [vmem:[%s166] sm:$0xf]
        %v193 = vld [vmem:[#allocation5] sm:$0xf]
        %v194 = vld [vmem:[#allocation5 + $0x4] sm:$0xf]
        %v197 = vunpack.c.l.b16 %v193
        %v198 = vunpack.c.l.b16 %v194
        %v199 = vpack.c.b16 %v198, %v197
        %vm201 = vcmask 130048
        %v203 = vsel %vm201, %v192, 0
        %205 = vmatprep.subr.bf16.mxu0 0
        %206 = vmatpush1.bf16.msra.mxu0 0
        %207 = vmatprep.subr.bf16.mxu0 0
        %208 = vmatpush1.bf16.msra.mxu0 0
        %209 = vmatprep.subr.bf16.mxu0 0
        %210 = vmatpush1.bf16.msra.mxu0 0
        %211 = vmatprep.subr.bf16.mxu0 0
        %212 = vmatpush1.bf16.msra.mxu0 0
        %213 = vmatprep.subr.bf16.mxu0 0
        %214 = vmatpush1.bf16.msra.mxu0 0
        %215 = vmatprep.subr.bf16.mxu0 0
        %216 = vmatpush1.bf16.msra.mxu0 0
        %217 = vmatprep.subr.bf16.mxu0 0
        %218 = vmatpush1.bf16.msra.mxu0 0
        %219 = vmatprep.subr.bf16.mxu0 0
        %220 = vmatpush1.bf16.msra.mxu0 %v199
        %221 = vmatprep.subr.bf16.mxu0 0
        %222 = vmatpush2.bf16.msra.mxu0 0
        %223 = vmatprep.subr.bf16.mxu0 0
        %224 = vmatpush2.bf16.msra.mxu0 0
        %225 = vmatprep.subr.bf16.mxu0 0
        %226 = vmatpush2.bf16.msra.mxu0 0
        %227 = vmatprep.subr.bf16.mxu0 0
        %228 = vmatpush2.bf16.msra.mxu0 0
        %229 = vmatprep.subr.bf16.mxu0 0
        %230 = vmatpush2.bf16.msra.mxu0 0
        %231 = vmatprep.subr.bf16.mxu0 0
        %232 = vmatpush2.bf16.msra.mxu0 0
        %233 = vmatprep.subr.bf16.mxu0 0
        %234 = vmatpush2.bf16.msra.mxu0 0
        %235 = vmatprep.subr.bf16.mxu0 0
        %236 = vmatpush2.bf16.msra.mxu0 0
        %237 = vmatprep.mubr.bf16.mxu0 0
        %238 = vmatmul.mubr.bf16.gmra.mxu0 %v203
        %v239 = vpop.f32.mrf.mxu0
        %v240 = vadd.f32 0.0, %v239
        %v241 = vpop.f32.mrf.mxu0
        %v242 = vpop.f32.mrf.mxu0
        %v243 = vpop.f32.mrf.mxu0
        %244 = vdwg.mxu0
        %v245 = vpack.c.bf16 %v240, %v240
        %vm246 = vcmask 257024
        %247 = vst.msk [vmem:[%s190] sm:$0xf] %vm246, %v245
        %s248 = sand.u32 %s91, 1
        %s249 = scalar_lea.sflag [#allocation4], %s248
        %s250 = sand.u32 %s91, 1
        %s251 = smul.addr %s250, 4
        %s252 = scalar_lea.vmem [#allocation7], %s251
        // Predicated region
        $region37: #{tpu_custom_call.1} parent=27 // pred_check
          %p253 = pneg %p101
        $region38: #{tpu_custom_call.1} parent=27 // pred_check_branch
          %255 = sbr.rel (%p253) target = $region40
        $region39: #{tpu_custom_call.1} parent=27 // pred_region
          %s257 = ssub.s32 64, 64
          %258 = vsyncadd %s249, %s257
          %s259 = sadd.s32 %s25, %s24
          %s260 = smul.addr %s259, 64
          %s261 = scalar_lea.hbm %s2, %s260
          %s263 = sshll.u32 %s252, 4
          %s264 = int_to_ptr.vmem [resolvable:$true] %s263
          %266 = dma.vmem_to_hbm [thread:$0]  %s264, 64, %s261, %s249
        $region40: #{tpu_custom_call.1} parent=27 // pred_fallthru
          _
      $region28: #{tpu_custom_call.1} parent=5 // pred_fallthru
        _
      %p267 = scmp.le.s32.totalorder 2, %s15
      // Predicated region
      $region41: #{tpu_custom_call.1} parent=5 // pred_check
        %p268 = pneg %p267
      $region42: #{tpu_custom_call.1} parent=5 // pred_check_branch
        %270 = sbr.rel (%p268) target = $region44
      $region43: #{tpu_custom_call.1} parent=5 // pred_region
        %s271 = ssub.s32 %s15, 2
        // Predicated region
        $region45: #{tpu_custom_call.1} parent=43 // pred_check
          %p272 = pneg %p107
        $region46: #{tpu_custom_call.1} parent=43 // pred_check_branch
          %274 = sbr.rel (%p272) target = $region48
        $region47: #{tpu_custom_call.1} parent=43 // pred_region
          %s275 = sand.u32 %s92, 1
          %s276 = scalar_lea.sflag [#allocation4], %s275
          %s277 = sand.u32 %s92, 1
          %s278 = smul.addr %s277, 4
          %s279 = scalar_lea.vmem [#allocation7], %s278
          %280 = dma.done %s276, 64
        $region48: #{tpu_custom_call.1} parent=43 // pred_fallthru
          _
      $region44: #{tpu_custom_call.1} parent=5 // pred_fallthru
        _
    $region6: #{tpu_custom_call.1} parent=1 // loop_footer
      %s19 = sadd.s32 1, %s15
    $region7: #{tpu_custom_call.1} parent=1 // loop_footer_branch
      %14 = sbr.rel target = $region3
    $region8: #{tpu_custom_call.1} parent=1 // loop_exit
      _
    %281 = vsyncpa [#allocation3], 1
    %s282 = scalar_lea.sflag [#allocation3], 1
    %283 = vsyncpa %s282, 1
    %284 = vsyncpa [#allocation6], 1
    %285 = vsyncpa [#allocation4], 1
    %s286 = scalar_lea.sflag [#allocation4], 1
    %287 = vsyncpa %s286, 1

</llo_original>
